<compile_context>
chip_gen: v7x
topology: tpu7x:2x2x1
jax: 0.10.0
libtpu: 0.0.40
codegen_flags: <defaults>
</compile_context>

<pallas_src>
import functools

import jax
import jax.numpy as jnp
from jax.experimental import pallas as pl
from jax.experimental.pallas import tpu as pltpu


def _round_up(x, m):
    return ((x + m - 1) // m) * m


def critic_kernel(x_ref, w1_ref, b1_ref, w2_ref, b2_ref, w3_ref, b3_ref, o_ref):
    # x_ref: (S, TB) lane-dense batch tile.
    x = x_ref[...]

    # Biases read once (hoisted, lane-broadcast column vectors).
    b1 = b1_ref[...]            # (16, 1)
    b2 = b2_ref[...]            # (16, 1)
    b3 = b3_ref[...]            # (1, 1)

    # Layer 1: (16, S) @ (S, TB) -> (16, TB); kernel is HBM-bound, MXU has slack.
    h1 = jnp.dot(w1_ref[...], x, preferred_element_type=jnp.float32) + b1
    h1 = jnp.maximum(h1, 0.0)
    # Layer 2: (16, 16) @ (16, TB) -> (16, TB)
    h2 = jnp.dot(w2_ref[...], h1, preferred_element_type=jnp.float32) + b2
    h2 = jnp.maximum(h2, 0.0)
    # Layer 3: (1, 16) @ (16, TB) -> (1, TB); full-width (unmasked) stores.
    v = jnp.dot(w3_ref[...], h2, preferred_element_type=jnp.float32) + b3
    o_ref[...] = v.astype(o_ref.dtype)


@functools.partial(jax.jit, static_argnames=("tile_b",))
def critic_forward(state, params, *, tile_b=1024):
    """state: (B, state_dim) float32 -> value: (B, 1) float32."""
    w1, b1, w2, b2, w3, b3 = params          # PyTorch-native: w (out,in), b (out,1)
    B, S = state.shape

    # Batch tile: 128-lane aligned, capped at tile_b. Pad B up to a tile multiple
    # so the last grid step never reads/writes out of range.
    tb = min(tile_b, _round_up(B, 128))
    Bp = _round_up(B, tb)

    x_t = jnp.transpose(state)               # (S, B): batch on lanes
    if Bp != B:
        x_t = jnp.pad(x_t, ((0, 0), (0, Bp - B)))

    const = lambda i: (0, 0)                 # weights/biases: VMEM-resident
    out = pl.pallas_call(
        critic_kernel,
        out_shape=jax.ShapeDtypeStruct((1, Bp), jnp.float32),
        grid=(Bp // tb,),
        in_specs=[
            pl.BlockSpec((S, tb), lambda i: (0, i)),   # batch-tiled input
            pl.BlockSpec(w1.shape, const),
            pl.BlockSpec(b1.shape, const),
            pl.BlockSpec(w2.shape, const),
            pl.BlockSpec(b2.shape, const),
            pl.BlockSpec(w3.shape, const),
            pl.BlockSpec(b3.shape, const),
        ],
        out_specs=pl.BlockSpec((1, tb), lambda i: (0, i)),
        compiler_params=pltpu.CompilerParams(
            dimension_semantics=("parallel",),         # megacore sharding on v7x
        ),
    )(x_t, w1, b1, w2, b2, w3, b3)

    return out[:, :B].T                      # (B, 1), same as PyTorch output


def init_critic_params(key, state_dim):
    """Deterministic init mimicking torch.nn.Linear (uniform +/- 1/sqrt(fan_in)).

    Weights stored PyTorch-native (out_features, in_features); biases (out, 1).
    """
    def linear(k, fan_in, fan_out):
        kw, kb = jax.random.split(k)
        bound = 1.0 / jnp.sqrt(jnp.float32(fan_in))
        w = jax.random.uniform(kw, (fan_out, fan_in), jnp.float32, -bound, bound)
        b = jax.random.uniform(kb, (fan_out, 1), jnp.float32, -bound, bound)
        return w, b

    k1, k2, k3 = jax.random.split(key, 3)
    w1, b1 = linear(k1, state_dim, 16)
    w2, b2 = linear(k2, 16, 16)
    w3, b3 = linear(k3, 16, 1)
    return (w1, b1, w2, b2, w3, b3)


def critic_reference(state, params):
    """Plain-JAX reference matching the PyTorch forward exactly."""
    w1, b1, w2, b2, w3, b3 = params
    h1 = jnp.maximum(state @ w1.T + b1.T, 0.0)
    h2 = jnp.maximum(h1 @ w2.T + b2.T, 0.0)
    return h2 @ w3.T + b3.T


if __name__ == "__main__":
    key = jax.random.PRNGKey(0)
    k_param, k_state = jax.random.split(key)

    state_dim = 3   # pendulum observation: [cos(theta), sin(theta), theta_dot]
    batch = 8

    params = init_critic_params(k_param, state_dim)
    state = jax.random.normal(k_state, (batch, state_dim), dtype=jnp.float32)

    out = critic_forward(state, params)
    out = jax.block_until_ready(out)

    ref = critic_reference(state, params)
    assert out.shape == (batch, 1), out.shape
    assert jnp.allclose(out, ref, atol=1e-5, rtol=1e-5), (out, ref)

    print("KERNEL_OK")
</pallas_src>

<mosaic_0001>
module attributes {stable_mosaic.version = 11 : i64} {
  func.func @critic_kernel(%arg0: i32, %arg1: memref<3x128xf32, #tpu.memory_space<vmem>>, %arg2: memref<16x3xf32, #tpu.memory_space<vmem>>, %arg3: memref<16x1xf32, #tpu.memory_space<vmem>>, %arg4: memref<16x16xf32, #tpu.memory_space<vmem>>, %arg5: memref<16x1xf32, #tpu.memory_space<vmem>>, %arg6: memref<1x16xf32, #tpu.memory_space<vmem>>, %arg7: memref<1x1xf32, #tpu.memory_space<vmem>>, %arg8: memref<1x128xf32, #tpu.memory_space<vmem>>) attributes {dimension_semantics = [#tpu.dimension_semantics<parallel>], iteration_bounds = array<i64: 1>, scalar_prefetch = 0 : i64, scratch_operands = 0 : i64, tpu.core_type = #tpu.core_type<tc>, window_params = [{transform_indices = @transform_0, window_bounds = array<i64: 3, 128>}, {pipeline_mode = #tpu.pipeline_mode<synchronous>, transform_indices = @transform_1, window_bounds = array<i64: 16, 3>}, {pipeline_mode = #tpu.pipeline_mode<synchronous>, transform_indices = @transform_2, window_bounds = array<i64: 16, 1>}, {pipeline_mode = #tpu.pipeline_mode<synchronous>, transform_indices = @transform_3, window_bounds = array<i64: 16, 16>}, {pipeline_mode = #tpu.pipeline_mode<synchronous>, transform_indices = @transform_4, window_bounds = array<i64: 16, 1>}, {pipeline_mode = #tpu.pipeline_mode<synchronous>, transform_indices = @transform_5, window_bounds = array<i64: 1, 16>}, {pipeline_mode = #tpu.pipeline_mode<synchronous>, transform_indices = @transform_6, window_bounds = array<i64: 1, 1>}, {transform_indices = @transform_7, window_bounds = array<i64: 1, 128>}]} {
    %c0 = arith.constant 0 : index
    %c0_0 = arith.constant 0 : index
    %0 = vector.load %arg1[%c0, %c0_0] : memref<3x128xf32, #tpu.memory_space<vmem>>, vector<3x128xf32>
    %c0_1 = arith.constant 0 : index
    %c0_2 = arith.constant 0 : index
    %1 = vector.load %arg3[%c0_1, %c0_2] : memref<16x1xf32, #tpu.memory_space<vmem>>, vector<16x1xf32>
    %c0_3 = arith.constant 0 : index
    %c0_4 = arith.constant 0 : index
    %2 = vector.load %arg5[%c0_3, %c0_4] : memref<16x1xf32, #tpu.memory_space<vmem>>, vector<16x1xf32>
    %c0_5 = arith.constant 0 : index
    %c0_6 = arith.constant 0 : index
    %3 = vector.load %arg7[%c0_5, %c0_6] : memref<1x1xf32, #tpu.memory_space<vmem>>, vector<1x1xf32>
    %c0_7 = arith.constant 0 : index
    %c0_8 = arith.constant 0 : index
    %4 = vector.load %arg2[%c0_7, %c0_8] : memref<16x3xf32, #tpu.memory_space<vmem>>, vector<16x3xf32>
    %cst = arith.constant dense<0.000000e+00> : vector<16x128xf32>
    %5 = tpu.matmul %4, %0, %cst {dimension_numbers = #tpu.dot_dimension_numbers<[1], [0], [0], [1], [0, 0, 1, 1], [], []>} : vector<16x3xf32>, vector<3x128xf32>, vector<16x128xf32> -> vector<16x128xf32>
    %6 = vector.broadcast %1 : vector<16x1xf32> to vector<16x128xf32>
    %7 = arith.addf %5, %6 : vector<16x128xf32>
    %cst_9 = arith.constant 0.000000e+00 : f32
    %8 = vector.broadcast %cst_9 : f32 to vector<16x128xf32>
    %9 = arith.maximumf %7, %8 : vector<16x128xf32>
    %c0_10 = arith.constant 0 : index
    %c0_11 = arith.constant 0 : index
    %10 = vector.load %arg4[%c0_10, %c0_11] : memref<16x16xf32, #tpu.memory_space<vmem>>, vector<16x16xf32>
    %cst_12 = arith.constant dense<0.000000e+00> : vector<16x128xf32>
    %11 = tpu.matmul %10, %9, %cst_12 {dimension_numbers = #tpu.dot_dimension_numbers<[1], [0], [0], [1], [0, 0, 1, 1], [], []>} : vector<16x16xf32>, vector<16x128xf32>, vector<16x128xf32> -> vector<16x128xf32>
    %12 = vector.broadcast %2 : vector<16x1xf32> to vector<16x128xf32>
    %13 = arith.addf %11, %12 : vector<16x128xf32>
    %cst_13 = arith.constant 0.000000e+00 : f32
    %14 = vector.broadcast %cst_13 : f32 to vector<16x128xf32>
    %15 = arith.maximumf %13, %14 : vector<16x128xf32>
    %c0_14 = arith.constant 0 : index
    %c0_15 = arith.constant 0 : index
    %16 = vector.load %arg6[%c0_14, %c0_15] : memref<1x16xf32, #tpu.memory_space<vmem>>, vector<1x16xf32>
    %cst_16 = arith.constant dense<0.000000e+00> : vector<1x128xf32>
    %17 = tpu.matmul %16, %15, %cst_16 {dimension_numbers = #tpu.dot_dimension_numbers<[1], [0], [0], [1], [0, 0, 1, 1], [], []>} : vector<1x16xf32>, vector<16x128xf32>, vector<1x128xf32> -> vector<1x128xf32>
    %18 = vector.broadcast %3 : vector<1x1xf32> to vector<1x128xf32>
    %19 = arith.addf %17, %18 : vector<1x128xf32>
    %c0_17 = arith.constant 0 : index
    %c0_18 = arith.constant 0 : index
    %20 = vector.load %arg8[%c0_17, %c0_18] : memref<1x128xf32, #tpu.memory_space<vmem>>, vector<1x128xf32>
    tpu.vector_store %arg8[%c0_17, %c0_18], %19 {strides = array<i32>} : memref<1x128xf32, #tpu.memory_space<vmem>>, vector<1x128xf32>,
    return
  }
  func.func @transform_0(%arg0: i32) -> (i32, i32) {
    %c0_i32 = arith.constant 0 : i32
    %c0_i32_0 = arith.constant 0 : i32
    return %c0_i32, %arg0 : i32, i32
  }
  func.func @transform_1(%arg0: i32) -> (i32, i32) {
    %c0_i32 = arith.constant 0 : i32
    %c0_i32_0 = arith.constant 0 : i32
    %c0_i32_1 = arith.constant 0 : i32
    return %c0_i32, %c0_i32_0 : i32, i32
  }
  func.func @transform_2(%arg0: i32) -> (i32, i32) {
    %c0_i32 = arith.constant 0 : i32
    %c0_i32_0 = arith.constant 0 : i32
    %c0_i32_1 = arith.constant 0 : i32
    return %c0_i32, %c0_i32_0 : i32, i32
  }
  func.func @transform_3(%arg0: i32) -> (i32, i32) {
    %c0_i32 = arith.constant 0 : i32
    %c0_i32_0 = arith.constant 0 : i32
    %c0_i32_1 = arith.constant 0 : i32
    return %c0_i32, %c0_i32_0 : i32, i32
  }
  func.func @transform_4(%arg0: i32) -> (i32, i32) {
    %c0_i32 = arith.constant 0 : i32
    %c0_i32_0 = arith.constant 0 : i32
    %c0_i32_1 = arith.constant 0 : i32
    return %c0_i32, %c0_i32_0 : i32, i32
  }
  func.func @transform_5(%arg0: i32) -> (i32, i32) {
    %c0_i32 = arith.constant 0 : i32
    %c0_i32_0 = arith.constant 0 : i32
    %c0_i32_1 = arith.constant 0 : i32
    return %c0_i32, %c0_i32_0 : i32, i32
  }
  func.func @transform_6(%arg0: i32) -> (i32, i32) {
    %c0_i32 = arith.constant 0 : i32
    %c0_i32_0 = arith.constant 0 : i32
    %c0_i32_1 = arith.constant 0 : i32
    return %c0_i32, %c0_i32_0 : i32, i32
  }
  func.func @transform_7(%arg0: i32) -> (i32, i32) {
    %c0_i32 = arith.constant 0 : i32
    %c0_i32_0 = arith.constant 0 : i32
    return %c0_i32, %arg0 : i32, i32
  }
}

</mosaic_0001>

<llo_original>
// kernel: critic_forward.1
$region0: #{critic_forward.1}
  #allocation0 [shape = 'u32[]', space=smem, size = 0x4, offset = 0x4, fixed_abs, tag = 'smem constant byte address 0x4 - core index']
  #allocation1 [shape = 'u32[144,128]{1,0:T(1,128)}', space=vmem, size = 0x12000, scoped, tag = 'internal scratch']
  #allocation2 [shape = 'f32[1,1]{1,0:T(1,128)S(1)}', space=vmem, size = 0x200, scoped, tag = 'scoped memory for critic_forward.1']
  %s0 = inlined_call_operand.vmem [shape: f32[3,128], index: 0, kind: input, shape index: {}]
  %s1 = inlined_call_operand.vmem [shape: f32[16,3], index: 1, kind: input, shape index: {}]
  %s2 = inlined_call_operand.vmem [shape: f32[16,1], index: 2, kind: input, shape index: {}]
  %s3 = inlined_call_operand.vmem [shape: f32[16,16], index: 3, kind: input, shape index: {}]
  %s4 = inlined_call_operand.vmem [shape: f32[16,1], index: 4, kind: input, shape index: {}]
  %s5 = inlined_call_operand.vmem [shape: f32[1,16], index: 5, kind: input, shape index: {}]
  %s6 = inlined_call_operand.<no memory space> [shape: f32[1,1], index: 6, kind: input, shape index: {}]
  %s7 = inlined_call_operand.vmem [shape: f32[1,128], index: 7, kind: output, shape index: {}]
  %s8 = sld [smem:[#allocation0]]
  $region38: #{critic_forward.1} parent=0
    _
  %s10 = ssub.s32 1, %s8
  %s11 = scalar_select 0, %s10, %s8
  %v12 = vstv %s6
  %13 = vst [vmem:[#allocation2] sm:$0x1] %v12
  // Predicated region
  $region2: #{critic_forward.1} parent=0 // pred_check
    _
  $region3: #{critic_forward.1} parent=0 // pred_check_branch
    %15 = sbr.rel (0) target = $region5
  $region4: #{critic_forward.1} parent=0 // pred_region
    _
  $region5: #{critic_forward.1} parent=0 // pred_fallthru
    _
  // Predicated region
  $region6: #{critic_forward.1} parent=0 // pred_check
    _
  $region7: #{critic_forward.1} parent=0 // pred_check_branch
    %17 = sbr.rel (0) target = $region9
  $region8: #{critic_forward.1} parent=0 // pred_region
    _
  $region9: #{critic_forward.1} parent=0 // pred_fallthru
    _
  // Predicated region
  $region10: #{critic_forward.1} parent=0 // pred_check
    _
  $region11: #{critic_forward.1} parent=0 // pred_check_branch
    %19 = sbr.rel (0) target = $region13
  $region12: #{critic_forward.1} parent=0 // pred_region
    _
  $region13: #{critic_forward.1} parent=0 // pred_fallthru
    _
  // Predicated region
  $region14: #{critic_forward.1} parent=0 // pred_check
    _
  $region15: #{critic_forward.1} parent=0 // pred_check_branch
    %21 = sbr.rel (0) target = $region17
  $region16: #{critic_forward.1} parent=0 // pred_region
    _
  $region17: #{critic_forward.1} parent=0 // pred_fallthru
    _
  // Predicated region
  $region18: #{critic_forward.1} parent=0 // pred_check
    _
  $region19: #{critic_forward.1} parent=0 // pred_check_branch
    %23 = sbr.rel (0) target = $region21
  $region20: #{critic_forward.1} parent=0 // pred_region
    _
  $region21: #{critic_forward.1} parent=0 // pred_fallthru
    _
  // Predicated region
  $region22: #{critic_forward.1} parent=0 // pred_check
    _
  $region23: #{critic_forward.1} parent=0 // pred_check_branch
    %25 = sbr.rel (0) target = $region25
  $region24: #{critic_forward.1} parent=0 // pred_region
    _
  $region25: #{critic_forward.1} parent=0 // pred_fallthru
    _
  // Predicated region
  $region26: #{critic_forward.1} parent=0 // pred_check
    _
  $region27: #{critic_forward.1} parent=0 // pred_check_branch
    %27 = sbr.rel (0) target = $region29
  $region28: #{critic_forward.1} parent=0 // pred_region
    _
  $region29: #{critic_forward.1} parent=0 // pred_fallthru
    _
  %v28 = vld [vmem:[%s0] sm:$0x7]
  %v29 = vld [vmem:[%s2] sm:$0xff]
  %v30 = vld [vmem:[%s2 + $0x8] sm:$0xff]
  %v31 = vld [vmem:[%s4] sm:$0xff]
  %v32 = vld [vmem:[%s4 + $0x8] sm:$0xff]
  %v33 = vld [vmem:[#allocation2] sm:$0x1]
  %v34 = vld [vmem:[%s1] sm:$0xff]
  %v35 = vld [vmem:[%s1 + $0x8] sm:$0xff]
  %37 = vset.pattern.permute.xlu0 0
  %38 = vperm.xlu0 %37, %v29
  %v39 = vpop.permute.xlu0 %38
  %42 = vset.pattern.permute.xlu0 0
  %43 = vperm.xlu0 %42, %v30
  %v44 = vpop.permute.xlu0 %43
  %vm46 = vcmask 23552
  %v48 = vsel %vm46, %v34, 0
  %v51 = vsel %vm46, %v35, 0
  %vm53 = vcmask 1042432
  %v55 = vsel %vm53, %v28, 0
  %57 = vmatprep.subr.mxu0 0.0
  %58 = vmatpush1.msra.mxu0 %v55
  %59 = vmatprep.subr.mxu0 0.0
  %60 = vmatpush1.msra.mxu0 0.0
  %61 = vmatprep.subr.mxu0 0.0
  %62 = vmatpush1.msra.mxu0 0.0
  %63 = vmatprep.subr.mxu0 0.0
  %64 = vmatpush1.msra.mxu0 0.0
  %65 = vmatprep.subr.mxu0 0.0
  %66 = vmatpush1.msra.mxu0 0.0
  %67 = vmatprep.subr.mxu0 0.0
  %68 = vmatpush1.msra.mxu0 0.0
  %69 = vmatprep.subr.mxu0 0.0
  %70 = vmatpush1.msra.mxu0 0.0
  %71 = vmatprep.subr.mxu0 0.0
  %72 = vmatpush1.msra.mxu0 0.0
  %73 = vmatprep.subr.mxu0 0.0
  %74 = vmatpush1.msra.mxu0 0.0
  %75 = vmatprep.subr.mxu0 0.0
  %76 = vmatpush1.msra.mxu0 0.0
  %77 = vmatprep.subr.mxu0 0.0
  %78 = vmatpush1.msra.mxu0 0.0
  %79 = vmatprep.subr.mxu0 0.0
  %80 = vmatpush1.msra.mxu0 0.0
  %81 = vmatprep.subr.mxu0 0.0
  %82 = vmatpush1.msra.mxu0 0.0
  %83 = vmatprep.subr.mxu0 0.0
  %84 = vmatpush1.msra.mxu0 0.0
  %85 = vmatprep.subr.mxu0 0.0
  %86 = vmatpush1.msra.mxu0 0.0
  %87 = vmatprep.subr.mxu0 0.0
  %88 = vmatpush1.msra.mxu0 0.0
  %89 = vmatprep.subr.mxu0 0.0
  %90 = vmatpush1.msra.mxu0 0.0
  %91 = vmatprep.subr.mxu0 0.0
  %92 = vmatpush1.msra.mxu0 0.0
  %93 = vmatprep.subr.mxu0 0.0
  %94 = vmatpush1.msra.mxu0 0.0
  %95 = vmatprep.subr.mxu0 0.0
  %96 = vmatpush1.msra.mxu0 0.0
  %97 = vmatprep.subr.mxu0 0.0
  %98 = vmatpush1.msra.mxu0 0.0
  %99 = vmatprep.subr.mxu0 0.0
  %100 = vmatpush1.msra.mxu0 0.0
  %101 = vmatprep.subr.mxu0 0.0
  %102 = vmatpush1.msra.mxu0 0.0
  %103 = vmatprep.subr.mxu0 0.0
  %104 = vmatpush1.msra.mxu0 0.0
  %105 = vmatprep.subr.mxu0 0.0
  %106 = vmatpush1.msra.mxu0 0.0
  %107 = vmatprep.subr.mxu0 0.0
  %108 = vmatpush1.msra.mxu0 0.0
  %109 = vmatprep.subr.mxu0 0.0
  %110 = vmatpush1.msra.mxu0 0.0
  %111 = vmatprep.subr.mxu0 0.0
  %112 = vmatpush1.msra.mxu0 0.0
  %113 = vmatprep.subr.mxu0 0.0
  %114 = vmatpush1.msra.mxu0 0.0
  %115 = vmatprep.subr.mxu0 0.0
  %116 = vmatpush1.msra.mxu0 0.0
  %117 = vmatprep.subr.mxu0 0.0
  %118 = vmatpush1.msra.mxu0 0.0
  %119 = vmatprep.subr.mxu0 0.0
  %120 = vmatpush1.msra.mxu0 0.0
  %121 = vmatprep.mubr.f32.mxu0 0.0
  %122 = vmatmul.mubr.f32.gmra.mrb[0].mxu0 %v48
  %v123 = vpop.f32.mrb[0].mxu0
  %v124 = vadd.f32 %v39, %v123
  %v125 = vpop.f32.mrb[0].mxu0
  %126 = vmatprep.mubr.f32.mxu0 0.0
  %127 = vmatmul.mubr.f32.gmra.mrb[0].mxu0 %v51
  %v128 = vpop.f32.mrb[0].mxu0
  %v129 = vadd.f32 %v44, %v128
  %v130 = vpop.f32.mrb[0].mxu0
  %131 = vdwg.mxu0
  %v132 = vmax.f32 %v124, 0.0
  %v133 = vmax.f32 %v129, 0.0
  %v134 = vld [vmem:[%s3] sm:$0xff]
  %v135 = vld [vmem:[%s3 + $0x8] sm:$0xff]
  %137 = vset.pattern.permute.xlu0 0
  %138 = vperm.xlu0 %137, %v31
  %v139 = vpop.permute.xlu0 %138
  %142 = vset.pattern.permute.xlu0 0
  %143 = vperm.xlu0 %142, %v32
  %v144 = vpop.permute.xlu0 %143
  %vm146 = vcmask 130048
  %v148 = vsel %vm146, %v134, 0
  %v151 = vsel %vm146, %v135, 0
  %153 = vmatprep.subr.mxu0 0.0
  %154 = vmatpush1.msra.mxu0 %v132
  %155 = vmatprep.subr.mxu0 0.0
  %156 = vmatpush1.msra.mxu0 %v133
  %157 = vmatprep.subr.mxu0 0.0
  %158 = vmatpush1.msra.mxu0 0.0
  %159 = vmatprep.subr.mxu0 0.0
  %160 = vmatpush1.msra.mxu0 0.0
  %161 = vmatprep.subr.mxu0 0.0
  %162 = vmatpush1.msra.mxu0 0.0
  %163 = vmatprep.subr.mxu0 0.0
  %164 = vmatpush1.msra.mxu0 0.0
  %165 = vmatprep.subr.mxu0 0.0
  %166 = vmatpush1.msra.mxu0 0.0
  %167 = vmatprep.subr.mxu0 0.0
  %168 = vmatpush1.msra.mxu0 0.0
  %169 = vmatprep.subr.mxu0 0.0
  %170 = vmatpush1.msra.mxu0 0.0
  %171 = vmatprep.subr.mxu0 0.0
  %172 = vmatpush1.msra.mxu0 0.0
  %173 = vmatprep.subr.mxu0 0.0
  %174 = vmatpush1.msra.mxu0 0.0
  %175 = vmatprep.subr.mxu0 0.0
  %176 = vmatpush1.msra.mxu0 0.0
  %177 = vmatprep.subr.mxu0 0.0
  %178 = vmatpush1.msra.mxu0 0.0
  %179 = vmatprep.subr.mxu0 0.0
  %180 = vmatpush1.msra.mxu0 0.0
  %181 = vmatprep.subr.mxu0 0.0
  %182 = vmatpush1.msra.mxu0 0.0
  %183 = vmatprep.subr.mxu0 0.0
  %184 = vmatpush1.msra.mxu0 0.0
  %185 = vmatprep.subr.mxu0 0.0
  %186 = vmatpush1.msra.mxu0 0.0
  %187 = vmatprep.subr.mxu0 0.0
  %188 = vmatpush1.msra.mxu0 0.0
  %189 = vmatprep.subr.mxu0 0.0
  %190 = vmatpush1.msra.mxu0 0.0
  %191 = vmatprep.subr.mxu0 0.0
  %192 = vmatpush1.msra.mxu0 0.0
  %193 = vmatprep.subr.mxu0 0.0
  %194 = vmatpush1.msra.mxu0 0.0
  %195 = vmatprep.subr.mxu0 0.0
  %196 = vmatpush1.msra.mxu0 0.0
  %197 = vmatprep.subr.mxu0 0.0
  %198 = vmatpush1.msra.mxu0 0.0
  %199 = vmatprep.subr.mxu0 0.0
  %200 = vmatpush1.msra.mxu0 0.0
  %201 = vmatprep.subr.mxu0 0.0
  %202 = vmatpush1.msra.mxu0 0.0
  %203 = vmatprep.subr.mxu0 0.0
  %204 = vmatpush1.msra.mxu0 0.0
  %205 = vmatprep.subr.mxu0 0.0
  %206 = vmatpush1.msra.mxu0 0.0
  %207 = vmatprep.subr.mxu0 0.0
  %208 = vmatpush1.msra.mxu0 0.0
  %209 = vmatprep.subr.mxu0 0.0
  %210 = vmatpush1.msra.mxu0 0.0
  %211 = vmatprep.subr.mxu0 0.0
  %212 = vmatpush1.msra.mxu0 0.0
  %213 = vmatprep.subr.mxu0 0.0
  %214 = vmatpush1.msra.mxu0 0.0
  %215 = vmatprep.subr.mxu0 0.0
  %216 = vmatpush1.msra.mxu0 0.0
  %217 = vmatprep.mubr.f32.mxu0 0.0
  %218 = vmatmul.mubr.f32.gmra.mrb[0].mxu0 %v148
  %v219 = vpop.f32.mrb[0].mxu0
  %v220 = vadd.f32 %v139, %v219
  %v221 = vpop.f32.mrb[0].mxu0
  %222 = vmatprep.mubr.f32.mxu0 0.0
  %223 = vmatmul.mubr.f32.gmra.mrb[0].mxu0 %v151
  %v224 = vpop.f32.mrb[0].mxu0
  %v225 = vadd.f32 %v144, %v224
  %v226 = vpop.f32.mrb[0].mxu0
  %227 = vdwg.mxu0
  %v228 = vmax.f32 %v220, 0.0
  %v229 = vmax.f32 %v225, 0.0
  %v230 = vld [vmem:[%s5] sm:$0x1]
  %232 = vset.pattern.permute.xlu0 0
  %233 = vperm.xlu0 %232, %v33
  %v234 = vpop.permute.xlu0 %233
  %v236 = vlaneseq
  %v237 = vshrl.u32 %v236, 7
  %v238 = vsub.s32 0, %v237
  %v239 = vrot.slane %v234, %v238
  %v241 = vsel %vm146, %v230, 0
  %243 = vmatprep.subr.mxu0 0.0
  %244 = vmatpush1.msra.mxu0 %v228
  %245 = vmatprep.subr.mxu0 0.0
  %246 = vmatpush1.msra.mxu0 %v229
  %247 = vmatprep.subr.mxu0 0.0
  %248 = vmatpush1.msra.mxu0 0.0
  %249 = vmatprep.subr.mxu0 0.0
  %250 = vmatpush1.msra.mxu0 0.0
  %251 = vmatprep.subr.mxu0 0.0
  %252 = vmatpush1.msra.mxu0 0.0
  %253 = vmatprep.subr.mxu0 0.0
  %254 = vmatpush1.msra.mxu0 0.0
  %255 = vmatprep.subr.mxu0 0.0
  %256 = vmatpush1.msra.mxu0 0.0
  %257 = vmatprep.subr.mxu0 0.0
  %258 = vmatpush1.msra.mxu0 0.0
  %259 = vmatprep.subr.mxu0 0.0
  %260 = vmatpush1.msra.mxu0 0.0
  %261 = vmatprep.subr.mxu0 0.0
  %262 = vmatpush1.msra.mxu0 0.0
  %263 = vmatprep.subr.mxu0 0.0
  %264 = vmatpush1.msra.mxu0 0.0
  %265 = vmatprep.subr.mxu0 0.0
  %266 = vmatpush1.msra.mxu0 0.0
  %267 = vmatprep.subr.mxu0 0.0
  %268 = vmatpush1.msra.mxu0 0.0
  %269 = vmatprep.subr.mxu0 0.0
  %270 = vmatpush1.msra.mxu0 0.0
  %271 = vmatprep.subr.mxu0 0.0
  %272 = vmatpush1.msra.mxu0 0.0
  %273 = vmatprep.subr.mxu0 0.0
  %274 = vmatpush1.msra.mxu0 0.0
  %275 = vmatprep.subr.mxu0 0.0
  %276 = vmatpush1.msra.mxu0 0.0
  %277 = vmatprep.subr.mxu0 0.0
  %278 = vmatpush1.msra.mxu0 0.0
  %279 = vmatprep.subr.mxu0 0.0
  %280 = vmatpush1.msra.mxu0 0.0
  %281 = vmatprep.subr.mxu0 0.0
  %282 = vmatpush1.msra.mxu0 0.0
  %283 = vmatprep.subr.mxu0 0.0
  %284 = vmatpush1.msra.mxu0 0.0
  %285 = vmatprep.subr.mxu0 0.0
  %286 = vmatpush1.msra.mxu0 0.0
  %287 = vmatprep.subr.mxu0 0.0
  %288 = vmatpush1.msra.mxu0 0.0
  %289 = vmatprep.subr.mxu0 0.0
  %290 = vmatpush1.msra.mxu0 0.0
  %291 = vmatprep.subr.mxu0 0.0
  %292 = vmatpush1.msra.mxu0 0.0
  %293 = vmatprep.subr.mxu0 0.0
  %294 = vmatpush1.msra.mxu0 0.0
  %295 = vmatprep.subr.mxu0 0.0
  %296 = vmatpush1.msra.mxu0 0.0
  %297 = vmatprep.subr.mxu0 0.0
  %298 = vmatpush1.msra.mxu0 0.0
  %299 = vmatprep.subr.mxu0 0.0
  %300 = vmatpush1.msra.mxu0 0.0
  %301 = vmatprep.subr.mxu0 0.0
  %302 = vmatpush1.msra.mxu0 0.0
  %303 = vmatprep.subr.mxu0 0.0
  %304 = vmatpush1.msra.mxu0 0.0
  %305 = vmatprep.subr.mxu0 0.0
  %306 = vmatpush1.msra.mxu0 0.0
  %307 = vmatprep.mubr.f32.mxu0 0.0
  %308 = vmatmul.mubr.f32.gmra.mrb[0].mxu0 %v241
  %v309 = vpop.f32.mrb[0].mxu0
  %v310 = vadd.f32 %v239, %v309
  %v311 = vpop.f32.mrb[0].mxu0
  %312 = vdwg.mxu0
  %313 = vst [vmem:[%s7] sm:$0x1] %v310
  // Predicated region
  $region30: #{critic_forward.1} parent=0 // pred_check
    _
  $region31: #{critic_forward.1} parent=0 // pred_check_branch
    %315 = sbr.rel (0) target = $region33
  $region32: #{critic_forward.1} parent=0 // pred_region
    _
  $region33: #{critic_forward.1} parent=0 // pred_fallthru
    _
  // Predicated region
  $region34: #{critic_forward.1} parent=0 // pred_check
    _
  $region35: #{critic_forward.1} parent=0 // pred_check_branch
    %317 = sbr.rel (0) target = $region37
  $region36: #{critic_forward.1} parent=0 // pred_region
    _
  $region37: #{critic_forward.1} parent=0 // pred_fallthru
    _

</llo_original>
